<compile_context>
chip_gen: v5e
topology: v5e:2x2
jax: 0.10.0
libtpu: 0.0.40
codegen_flags: <defaults>
</compile_context>

<pallas_src>
import functools
import math

import numpy as np
import jax
import jax.numpy as jnp
from jax.experimental import pallas as pl
from jax.experimental.pallas import tpu as pltpu


# ---------------------------------------------------------------------------
# helpers
# ---------------------------------------------------------------------------
def _round_up(x, m):
    return (x + m - 1) // m * m


def _sublane_multiple(dtype):
    # Sub-32-bit dtypes pack along sublanes: 8 rows f32, 16 bf16, 32 int8/fp8.
    return max(8, 32 // jnp.dtype(dtype).itemsize)


def _dot_f32_exact(a, b):
    """f32-accurate `a @ b` on the MXU regardless of the default f32 pass count.

    `b` is a 0/1 segment matrix (exactly bf16-representable).  Splitting `a`
    into a bf16-exact high part plus a small residual keeps every MXU pass
    exact; accumulation is f32.  The MXU is otherwise idle here, so the extra
    pass is free.
    """
    a_hi = a.astype(jnp.bfloat16).astype(jnp.float32)
    a_lo = a - a_hi
    return (jnp.dot(a_hi, b, preferred_element_type=jnp.float32) +
            jnp.dot(a_lo, b, preferred_element_type=jnp.float32))


# ---------------------------------------------------------------------------
# kernels
# ---------------------------------------------------------------------------
def _ln_kernel_rowwise(x_ref, a_ref, b_ref, o_ref, *, eps, h):
    """One LayerNorm row per tile row (block width == H >= 128)."""
    x = x_ref[...].astype(jnp.float32)                     # (tR, H)
    inv_hm1 = (1.0 / (h - 1)) if h > 1 else float("nan")   # torch std: unbiased
    mu = jnp.mean(x, axis=-1, keepdims=True)               # (tR, 1)
    diff = x - mu
    var = jnp.sum(diff * diff, axis=-1, keepdims=True) * inv_hm1
    denom = jnp.sqrt(var) + eps
    # EUP reciprocal (its own VLIW slot) + one Newton step -> ~f32-exact; the
    # wide (tR, H) normalization is then a plain VPU multiply.
    inv = pl.reciprocal(denom, approx=True)
    inv = inv * (2.0 - denom * inv)
    out = diff * inv * a_ref[...] + b_ref[...]
    o_ref[...] = out.astype(o_ref.dtype)


def _ln_kernel_grouped(x_ref, a_ref, b_ref, m_ref, mt_ref, o_ref, *, eps, h):
    """G LayerNorm rows folded into the lane axis (block width W = G*H, lane dense).

    Per-row mean/var become segment sums against a constant one-hot matrix on
    the otherwise-idle MXU; results are broadcast back to full width the same
    way, so the lane layout stays (tR, W) dense throughout.
    """
    x = x_ref[...].astype(jnp.float32)                     # (tR, W)
    m = m_ref[...]                                         # (W, G) one-hot
    mt = mt_ref[...]                                       # (G, W) one-hot.T
    inv_hm1 = (1.0 / (h - 1)) if h > 1 else float("nan")   # torch std: unbiased

    seg_sum = _dot_f32_exact(x, m)                         # (tR, G)
    mu = seg_sum * (1.0 / h)
    diff = x - _dot_f32_exact(mu, mt)                      # (tR, W)
    var = _dot_f32_exact(diff * diff, m) * inv_hm1         # (tR, G)
    denom = jnp.sqrt(var) + eps
    inv = pl.reciprocal(denom, approx=True)                # EUP
    inv = inv * (2.0 - denom * inv)                        # Newton -> ~f32-exact
    inv_full = _dot_f32_exact(inv, mt)                     # (tR, W)
    out = diff * inv_full * a_ref[...] + b_ref[...]
    o_ref[...] = out.astype(o_ref.dtype)


# ---------------------------------------------------------------------------
# wrapper
# ---------------------------------------------------------------------------
def layer_norm(x, a_2, b_2, *, eps=1e-3,
               vmem_budget_bytes=32 * 1024 * 1024, max_rows=2048):
    """Pallas LayerNormalization over the last axis of x (any leading dims)."""
    orig_shape = x.shape
    H = int(orig_shape[-1])
    N = int(np.prod(orig_shape[:-1])) if len(orig_shape) > 1 else 1

    # ---- lane-dense grouping for small H ----------------------------------
    # H < 128 wastes (128-H)/128 of every vreg / DMA lane and lowers to masked
    # vst.msk stores.  Fold G = lcm(H,128)/H consecutive rows into the lane
    # axis so the block width W is a multiple of 128.
    G = 1
    if H < 128:
        g = ((H * 128) // math.gcd(H, 128)) // H           # lcm(H, 128) // H
        if g <= 256 and N % g == 0:
            G = g
    W = G * H
    Nr = N // G

    x2 = x.reshape(Nr, W)                                  # contiguous: no copy
    a2 = a_2.reshape(1, H).astype(jnp.float32)
    b2 = b_2.reshape(1, H).astype(jnp.float32)
    if G > 1:
        a2 = jnp.tile(a2, (1, G))
        b2 = jnp.tile(b2, (1, G))

    # ---- VMEM-budget-driven row tile ---------------------------------------
    # Per pipelined row: 2x double-buffered input + 2x double-buffered output
    # tiles plus ~3 f32 temporaries (x cast, diff, out) in the kernel body.
    itemsize = jnp.dtype(x.dtype).itemsize
    per_row_bytes = W * (2 * itemsize + 2 * itemsize + 3 * 4)
    sl = _sublane_multiple(x.dtype)
    if Nr < sl:
        tR = Nr                                            # block == full row dim (allowed)
    else:
        tR = min(max_rows, vmem_budget_bytes // per_row_bytes, (Nr // sl) * sl)
        tR = max(sl, (tR // sl) * sl)

    # No host-side padding: cdiv grid + masked partial last block.
    grid = (pl.cdiv(Nr, tR),)

    x_spec = pl.BlockSpec((tR, W), lambda i: (i, 0))
    p_spec = pl.BlockSpec((1, W), lambda i: (0, 0))
    out_spec = pl.BlockSpec((tR, W), lambda i: (i, 0))
    compiler_params = pltpu.CompilerParams(
        dimension_semantics=("parallel",),
        vmem_limit_bytes=48 * 1024 * 1024,
    )
    out_shape = jax.ShapeDtypeStruct((Nr, W), x.dtype)

    if G == 1:
        out = pl.pallas_call(
            functools.partial(_ln_kernel_rowwise, eps=float(eps), h=H),
            out_shape=out_shape,
            grid=grid,
            in_specs=[x_spec, p_spec, p_spec],
            out_specs=out_spec,
            compiler_params=compiler_params,
        )(x2, a2, b2)
    else:
        # Constant one-hot segment matrix: m[c, p] = 1 iff c // H == p.
        m_np = np.kron(np.eye(G, dtype=np.float32), np.ones((H, 1), np.float32))
        m = jnp.asarray(m_np)                              # (W, G)
        mt = jnp.asarray(np.ascontiguousarray(m_np.T))     # (G, W)
        out = pl.pallas_call(
            functools.partial(_ln_kernel_grouped, eps=float(eps), h=H),
            out_shape=out_shape,
            grid=grid,
            in_specs=[x_spec, p_spec, p_spec,
                      pl.BlockSpec((W, G), lambda i: (0, 0)),
                      pl.BlockSpec((G, W), lambda i: (0, 0))],
            out_specs=out_spec,
            compiler_params=compiler_params,
        )(x2, a2, b2, m, mt)

    return out.reshape(orig_shape)


# ---------------------------------------------------------------------------
# pure-JAX reference (torch semantics: unbiased std, eps added to sigma)
# ---------------------------------------------------------------------------
def reference_layer_norm(x, a_2, b_2, eps=1e-3):
    h = x.shape[-1]
    mu = jnp.mean(x, axis=-1, keepdims=True)
    diff = x - mu
    sigma = jnp.sqrt(jnp.sum(diff * diff, axis=-1, keepdims=True) / (h - 1))
    return diff / (sigma + eps) * a_2 + b_2


# ---------------------------------------------------------------------------
if __name__ == "__main__":
    key = jax.random.PRNGKey(0)
    kx, ka, kb, k2, k3, k4 = jax.random.split(key, 6)

    # LayerNormalization(hidden_dim=32) on a (B, S, H) batch — small-H path
    # (G = 4 rows folded into the lane axis, MXU segment reductions).
    B, S, H = 2, 8, 32
    x = jax.random.normal(kx, (B, S, H), dtype=jnp.float32)
    a_2 = (jnp.ones((H,), jnp.float32)
           + 0.1 * jax.random.normal(ka, (H,), dtype=jnp.float32))
    b_2 = 0.1 * jax.random.normal(kb, (H,), dtype=jnp.float32)

    out = jax.block_until_ready(layer_norm(x, a_2, b_2, eps=1e-3))
    ref = reference_layer_norm(x, a_2, b_2, eps=1e-3)
    np.testing.assert_allclose(np.asarray(out), np.asarray(ref),
                               rtol=2e-4, atol=2e-4)

    # Row-wise path with a masked partial last block (15 rows, tile = 8).
    a_big = jnp.ones((256,), jnp.float32)
    b_big = jnp.zeros((256,), jnp.float32)
    x2 = jax.random.normal(k2, (3, 5, 256), dtype=jnp.float32)
    out2 = jax.block_until_ready(layer_norm(x2, a_big, b_big, eps=1e-3))
    np.testing.assert_allclose(np.asarray(out2),
                               np.asarray(reference_layer_norm(x2, a_big, b_big)),
                               rtol=2e-4, atol=2e-4)

    # Row-wise path with several grid steps (forced small tile).
    x3 = jax.random.normal(k3, (4, 6, 256), dtype=jnp.float32)
    out3 = jax.block_until_ready(layer_norm(x3, a_big, b_big, eps=1e-3, max_rows=8))
    np.testing.assert_allclose(np.asarray(out3),
                               np.asarray(reference_layer_norm(x3, a_big, b_big)),
                               rtol=2e-4, atol=2e-4)

    # Grouped path with a masked partial last block (10 grouped rows, tile = 8).
    x4 = jax.random.normal(k4, (5, 8, H), dtype=jnp.float32)
    out4 = jax.block_until_ready(layer_norm(x4, a_2, b_2, eps=1e-3))
    np.testing.assert_allclose(np.asarray(out4),
                               np.asarray(reference_layer_norm(x4, a_2, b_2)),
                               rtol=2e-4, atol=2e-4)

    print("KERNEL_OK")
</pallas_src>

<mosaic_0001>
module attributes {stable_mosaic.version = 11 : i64} {
  func.func @_ln_kernel_grouped(%arg0: i32, %arg1: memref<4x128xf32, #tpu.memory_space<vmem>>, %arg2: memref<1x128xf32, #tpu.memory_space<vmem>>, %arg3: memref<1x128xf32, #tpu.memory_space<vmem>>, %arg4: memref<128x4xf32, #tpu.memory_space<vmem>>, %arg5: memref<4x128xf32, #tpu.memory_space<vmem>>, %arg6: memref<4x128xf32, #tpu.memory_space<vmem>>) attributes {dimension_semantics = [#tpu.dimension_semantics<parallel>], iteration_bounds = array<i64: 1>, scalar_prefetch = 0 : i64, scratch_operands = 0 : i64, tpu.core_type = #tpu.core_type<tc>, window_params = [{transform_indices = @transform_0, window_bounds = array<i64: 4, 128>}, {pipeline_mode = #tpu.pipeline_mode<synchronous>, transform_indices = @transform_1, window_bounds = array<i64: 1, 128>}, {pipeline_mode = #tpu.pipeline_mode<synchronous>, transform_indices = @transform_2, window_bounds = array<i64: 1, 128>}, {pipeline_mode = #tpu.pipeline_mode<synchronous>, transform_indices = @transform_3, window_bounds = array<i64: 128, 4>}, {pipeline_mode = #tpu.pipeline_mode<synchronous>, transform_indices = @transform_4, window_bounds = array<i64: 4, 128>}, {transform_indices = @transform_5, window_bounds = array<i64: 4, 128>}]} {
    %c0 = arith.constant 0 : index
    %c0_0 = arith.constant 0 : index
    %0 = vector.load %arg1[%c0, %c0_0] : memref<4x128xf32, #tpu.memory_space<vmem>>, vector<4x128xf32>
    %c0_1 = arith.constant 0 : index
    %c0_2 = arith.constant 0 : index
    %1 = vector.load %arg4[%c0_1, %c0_2] : memref<128x4xf32, #tpu.memory_space<vmem>>, vector<128x4xf32>
    %c0_3 = arith.constant 0 : index
    %c0_4 = arith.constant 0 : index
    %2 = vector.load %arg5[%c0_3, %c0_4] : memref<4x128xf32, #tpu.memory_space<vmem>>, vector<4x128xf32>
    %3 = arith.truncf %0 : vector<4x128xf32> to vector<4x128xbf16>
    %4 = arith.extf %3 : vector<4x128xbf16> to vector<4x128xf32>
    %5 = arith.subf %0, %4 : vector<4x128xf32>
    %cst = arith.constant dense<0.000000e+00> : vector<4x4xf32>
    %6 = tpu.matmul %4, %1, %cst {dimension_numbers = #tpu.dot_dimension_numbers<[1], [0], [0], [1], [0, 0, 1, 1], [], []>} : vector<4x128xf32>, vector<128x4xf32>, vector<4x4xf32> -> vector<4x4xf32>
    %cst_5 = arith.constant dense<0.000000e+00> : vector<4x4xf32>
    %7 = tpu.matmul %5, %1, %cst_5 {dimension_numbers = #tpu.dot_dimension_numbers<[1], [0], [0], [1], [0, 0, 1, 1], [], []>} : vector<4x128xf32>, vector<128x4xf32>, vector<4x4xf32> -> vector<4x4xf32>
    %8 = arith.addf %6, %7 : vector<4x4xf32>
    %cst_6 = arith.constant 3.125000e-02 : f32
    %9 = vector.broadcast %cst_6 : f32 to vector<4x4xf32>
    %10 = arith.mulf %8, %9 : vector<4x4xf32>
    %11 = arith.truncf %10 : vector<4x4xf32> to vector<4x4xbf16>
    %12 = arith.extf %11 : vector<4x4xbf16> to vector<4x4xf32>
    %13 = arith.subf %10, %12 : vector<4x4xf32>
    %cst_7 = arith.constant dense<0.000000e+00> : vector<4x128xf32>
    %14 = tpu.matmul %12, %2, %cst_7 {dimension_numbers = #tpu.dot_dimension_numbers<[1], [0], [0], [1], [0, 0, 1, 1], [], []>} : vector<4x4xf32>, vector<4x128xf32>, vector<4x128xf32> -> vector<4x128xf32>
    %cst_8 = arith.constant dense<0.000000e+00> : vector<4x128xf32>
    %15 = tpu.matmul %13, %2, %cst_8 {dimension_numbers = #tpu.dot_dimension_numbers<[1], [0], [0], [1], [0, 0, 1, 1], [], []>} : vector<4x4xf32>, vector<4x128xf32>, vector<4x128xf32> -> vector<4x128xf32>
    %16 = arith.addf %14, %15 : vector<4x128xf32>
    %17 = arith.subf %0, %16 : vector<4x128xf32>
    %18 = arith.mulf %17, %17 : vector<4x128xf32>
    %19 = arith.truncf %18 : vector<4x128xf32> to vector<4x128xbf16>
    %20 = arith.extf %19 : vector<4x128xbf16> to vector<4x128xf32>
    %21 = arith.subf %18, %20 : vector<4x128xf32>
    %cst_9 = arith.constant dense<0.000000e+00> : vector<4x4xf32>
    %22 = tpu.matmul %20, %1, %cst_9 {dimension_numbers = #tpu.dot_dimension_numbers<[1], [0], [0], [1], [0, 0, 1, 1], [], []>} : vector<4x128xf32>, vector<128x4xf32>, vector<4x4xf32> -> vector<4x4xf32>
    %cst_10 = arith.constant dense<0.000000e+00> : vector<4x4xf32>
    %23 = tpu.matmul %21, %1, %cst_10 {dimension_numbers = #tpu.dot_dimension_numbers<[1], [0], [0], [1], [0, 0, 1, 1], [], []>} : vector<4x128xf32>, vector<128x4xf32>, vector<4x4xf32> -> vector<4x4xf32>
    %24 = arith.addf %22, %23 : vector<4x4xf32>
    %cst_11 = arith.constant 0.0322580636 : f32
    %25 = vector.broadcast %cst_11 : f32 to vector<4x4xf32>
    %26 = arith.mulf %24, %25 : vector<4x4xf32>
    %27 = math.sqrt %26 : vector<4x4xf32>
    %cst_12 = arith.constant 1.000000e-03 : f32
    %28 = vector.broadcast %cst_12 : f32 to vector<4x4xf32>
    %29 = arith.addf %27, %28 : vector<4x4xf32>
    %30 = tpu.reciprocal %29 {approx = true} : vector<4x4xf32> -> vector<4x4xf32>
    %31 = arith.mulf %29, %30 : vector<4x4xf32>
    %cst_13 = arith.constant 2.000000e+00 : f32
    %32 = vector.broadcast %cst_13 : f32 to vector<4x4xf32>
    %33 = arith.subf %32, %31 : vector<4x4xf32>
    %34 = arith.mulf %30, %33 : vector<4x4xf32>
    %35 = arith.truncf %34 : vector<4x4xf32> to vector<4x4xbf16>
    %36 = arith.extf %35 : vector<4x4xbf16> to vector<4x4xf32>
    %37 = arith.subf %34, %36 : vector<4x4xf32>
    %cst_14 = arith.constant dense<0.000000e+00> : vector<4x128xf32>
    %38 = tpu.matmul %36, %2, %cst_14 {dimension_numbers = #tpu.dot_dimension_numbers<[1], [0], [0], [1], [0, 0, 1, 1], [], []>} : vector<4x4xf32>, vector<4x128xf32>, vector<4x128xf32> -> vector<4x128xf32>
    %cst_15 = arith.constant dense<0.000000e+00> : vector<4x128xf32>
    %39 = tpu.matmul %37, %2, %cst_15 {dimension_numbers = #tpu.dot_dimension_numbers<[1], [0], [0], [1], [0, 0, 1, 1], [], []>} : vector<4x4xf32>, vector<4x128xf32>, vector<4x128xf32> -> vector<4x128xf32>
    %40 = arith.addf %38, %39 : vector<4x128xf32>
    %41 = arith.mulf %17, %40 : vector<4x128xf32>
    %c0_16 = arith.constant 0 : index
    %c0_17 = arith.constant 0 : index
    %42 = vector.load %arg2[%c0_16, %c0_17] : memref<1x128xf32, #tpu.memory_space<vmem>>, vector<1x128xf32>
    %43 = vector.broadcast %42 : vector<1x128xf32> to vector<4x128xf32>
    %44 = arith.mulf %41, %43 : vector<4x128xf32>
    %c0_18 = arith.constant 0 : index
    %c0_19 = arith.constant 0 : index
    %45 = vector.load %arg3[%c0_18, %c0_19] : memref<1x128xf32, #tpu.memory_space<vmem>>, vector<1x128xf32>
    %46 = vector.broadcast %45 : vector<1x128xf32> to vector<4x128xf32>
    %47 = arith.addf %44, %46 : vector<4x128xf32>
    %c0_20 = arith.constant 0 : index
    %c0_21 = arith.constant 0 : index
    %48 = vector.load %arg6[%c0_20, %c0_21] : memref<4x128xf32, #tpu.memory_space<vmem>>, vector<4x128xf32>
    tpu.vector_store %arg6[%c0_20, %c0_21], %47 {strides = array<i32>} : memref<4x128xf32, #tpu.memory_space<vmem>>, vector<4x128xf32>,
    return
  }
  func.func @transform_0(%arg0: i32) -> (i32, i32) {
    %c0_i32 = arith.constant 0 : i32
    %c0_i32_0 = arith.constant 0 : i32
    return %arg0, %c0_i32 : i32, i32
  }
  func.func @transform_1(%arg0: i32) -> (i32, i32) {
    %c0_i32 = arith.constant 0 : i32
    %c0_i32_0 = arith.constant 0 : i32
    %c0_i32_1 = arith.constant 0 : i32
    return %c0_i32, %c0_i32_0 : i32, i32
  }
  func.func @transform_2(%arg0: i32) -> (i32, i32) {
    %c0_i32 = arith.constant 0 : i32
    %c0_i32_0 = arith.constant 0 : i32
    %c0_i32_1 = arith.constant 0 : i32
    return %c0_i32, %c0_i32_0 : i32, i32
  }
  func.func @transform_3(%arg0: i32) -> (i32, i32) {
    %c0_i32 = arith.constant 0 : i32
    %c0_i32_0 = arith.constant 0 : i32
    %c0_i32_1 = arith.constant 0 : i32
    return %c0_i32, %c0_i32_0 : i32, i32
  }
  func.func @transform_4(%arg0: i32) -> (i32, i32) {
    %c0_i32 = arith.constant 0 : i32
    %c0_i32_0 = arith.constant 0 : i32
    %c0_i32_1 = arith.constant 0 : i32
    return %c0_i32, %c0_i32_0 : i32, i32
  }
  func.func @transform_5(%arg0: i32) -> (i32, i32) {
    %c0_i32 = arith.constant 0 : i32
    %c0_i32_0 = arith.constant 0 : i32
    return %arg0, %c0_i32 : i32, i32
  }
}

</mosaic_0001>

<llo_original>
// kernel: tpu_custom_call.1
$region0: #{tpu_custom_call.1}
  #allocation0 [shape = 'u32[]', space=smem, size = 0x4, offset = 0x4, fixed_abs, tag = 'smem constant byte address 0x4 - core index']
  #allocation1 [shape = 'u32[72,128]{1,0:T(1,128)}', space=vmem, size = 0x9000, scoped, tag = 'internal scratch']
  %s0 = inlined_call_operand.vmem [shape: f32[4,128], index: 0, kind: input, shape index: {}]
  %s1 = inlined_call_operand.vmem [shape: f32[1,128], index: 1, kind: input, shape index: {}]
  %s2 = inlined_call_operand.vmem [shape: f32[1,128], index: 2, kind: input, shape index: {}]
  %s3 = inlined_call_operand.vmem [shape: f32[128,4], index: 3, kind: input, shape index: {}]
  %s4 = inlined_call_operand.vmem [shape: f32[4,128], index: 4, kind: input, shape index: {}]
  %s5 = inlined_call_operand.hbm [shape: f32[4,128], index: 5, kind: output, shape index: {}]
  %s6 = sld [smem:[#allocation0]]
  $region30: #{tpu_custom_call.1} parent=0
    _
  %s8 = ssub.s32 1, %s6
  %s9 = scalar_select 0, %s8, %s6
  $region1: #{tpu_custom_call.1} parent=0
    #allocation2 [shape = 'u8[2048]{0}', space=vmem, size = 0x800, scoped, tag = 'output window, operand 0, single buffered']
    #allocation3 [shape = 's32[1]{0}', space=sflag, size = 0x4, scoped, tag = 'scoped memory for tpu_custom_call.1']
    %10 = vsyncpa [#allocation3], 0
    // Predicated region
    $region2: #{tpu_custom_call.1} parent=1 // pred_check
      _
    $region3: #{tpu_custom_call.1} parent=1 // pred_check_branch
      %12 = sbr.rel (0) target = $region5
    $region4: #{tpu_custom_call.1} parent=1 // pred_region
      _
    $region5: #{tpu_custom_call.1} parent=1 // pred_fallthru
      _
    // Predicated region
    $region6: #{tpu_custom_call.1} parent=1 // pred_check
      _
    $region7: #{tpu_custom_call.1} parent=1 // pred_check_branch
      %14 = sbr.rel (0) target = $region9
    $region8: #{tpu_custom_call.1} parent=1 // pred_region
      _
    $region9: #{tpu_custom_call.1} parent=1 // pred_fallthru
      _
    // Predicated region
    $region10: #{tpu_custom_call.1} parent=1 // pred_check
      _
    $region11: #{tpu_custom_call.1} parent=1 // pred_check_branch
      %16 = sbr.rel (0) target = $region13
    $region12: #{tpu_custom_call.1} parent=1 // pred_region
      _
    $region13: #{tpu_custom_call.1} parent=1 // pred_fallthru
      _
    // Predicated region
    $region14: #{tpu_custom_call.1} parent=1 // pred_check
      _
    $region15: #{tpu_custom_call.1} parent=1 // pred_check_branch
      %18 = sbr.rel (0) target = $region17
    $region16: #{tpu_custom_call.1} parent=1 // pred_region
      _
    $region17: #{tpu_custom_call.1} parent=1 // pred_fallthru
      _
    // Predicated region
    $region18: #{tpu_custom_call.1} parent=1 // pred_check
      _
    $region19: #{tpu_custom_call.1} parent=1 // pred_check_branch
      %20 = sbr.rel (0) target = $region21
    $region20: #{tpu_custom_call.1} parent=1 // pred_region
      _
    $region21: #{tpu_custom_call.1} parent=1 // pred_fallthru
      _
    %v21 = vld [vmem:[%s0] sm:$0xf]
    %v22 = vld [vmem:[%s3] sm:$0xff]
    %v23 = vld [vmem:[%s3 + $0x8] sm:$0xff]
    %v24 = vld [vmem:[%s3 + $0x10] sm:$0xff]
    %v25 = vld [vmem:[%s3 + $0x18] sm:$0xff]
    %v26 = vld [vmem:[%s3 + $0x20] sm:$0xff]
    %v27 = vld [vmem:[%s3 + $0x28] sm:$0xff]
    %v28 = vld [vmem:[%s3 + $0x30] sm:$0xff]
    %v29 = vld [vmem:[%s3 + $0x38] sm:$0xff]
    %v30 = vld [vmem:[%s3 + $0x40] sm:$0xff]
    %v31 = vld [vmem:[%s3 + $0x48] sm:$0xff]
    %v32 = vld [vmem:[%s3 + $0x50] sm:$0xff]
    %v33 = vld [vmem:[%s3 + $0x58] sm:$0xff]
    %v34 = vld [vmem:[%s3 + $0x60] sm:$0xff]
    %v35 = vld [vmem:[%s3 + $0x68] sm:$0xff]
    %v36 = vld [vmem:[%s3 + $0x70] sm:$0xff]
    %v37 = vld [vmem:[%s3 + $0x78] sm:$0xff]
    %v38 = vld [vmem:[%s4] sm:$0xf]
    %v39 = vpack.c.bf16 %v21, %v21
    %v40 = vunpack.c.l.bf16 %v39
    %v41 = vsub.f32 %v21, %v40
    %42 = vmatpush.msra.mxu0 %v37
    %43 = vmatpush.msra.mxu0 %v36
    %44 = vmatpush.msra.mxu0 %v35
    %45 = vmatpush.msra.mxu0 %v34
    %46 = vmatpush.msra.mxu0 %v33
    %47 = vmatpush.msra.mxu0 %v32
    %48 = vmatpush.msra.mxu0 %v31
    %49 = vmatpush.msra.mxu0 %v30
    %50 = vmatpush.msra.mxu0 %v29
    %51 = vmatpush.msra.mxu0 %v28
    %52 = vmatpush.msra.mxu0 %v27
    %53 = vmatpush.msra.mxu0 %v26
    %54 = vmatpush.msra.mxu0 %v25
    %55 = vmatpush.msra.mxu0 %v24
    %56 = vmatpush.msra.mxu0 %v23
    %57 = vmatpush.msra.mxu0 %v22
    %58 = vmatmul.f32.gmra.mxu0 %v41
    %v59 = vpop.f32.mrf.mxu0
    %v60 = vadd.f32 0.0, %v59
    %61 = vdwg.mxu0
    %62 = vmatpush.msra.mxu0 %v37
    %63 = vmatpush.msra.mxu0 %v36
    %64 = vmatpush.msra.mxu0 %v35
    %65 = vmatpush.msra.mxu0 %v34
    %66 = vmatpush.msra.mxu0 %v33
    %67 = vmatpush.msra.mxu0 %v32
    %68 = vmatpush.msra.mxu0 %v31
    %69 = vmatpush.msra.mxu0 %v30
    %70 = vmatpush.msra.mxu0 %v29
    %71 = vmatpush.msra.mxu0 %v28
    %72 = vmatpush.msra.mxu0 %v27
    %73 = vmatpush.msra.mxu0 %v26
    %74 = vmatpush.msra.mxu0 %v25
    %75 = vmatpush.msra.mxu0 %v24
    %76 = vmatpush.msra.mxu0 %v23
    %77 = vmatpush.msra.mxu0 %v22
    %78 = vmatmul.f32.gmra.mxu0 %v40
    %v79 = vpop.f32.mrf.mxu0
    %v80 = vadd.f32 %v60, %v79
    %81 = vdwg.mxu0
    %v82 = vmul.f32 %v80, 0.03125
    %v83 = vpack.c.bf16 %v82, %v82
    %v84 = vunpack.c.l.bf16 %v83
    %v85 = vsub.f32 %v82, %v84
    %vm86 = vcmask 31744
    %v88 = vsel %vm86, %v85, 0
    %vm90 = vcmask 1043456
    %v92 = vsel %vm90, %v38, 0
    %94 = vmatpush.msra.mxu0 0.0
    %95 = vmatpush.msra.mxu0 0.0
    %96 = vmatpush.msra.mxu0 0.0
    %97 = vmatpush.msra.mxu0 0.0
    %98 = vmatpush.msra.mxu0 0.0
    %99 = vmatpush.msra.mxu0 0.0
    %100 = vmatpush.msra.mxu0 0.0
    %101 = vmatpush.msra.mxu0 0.0
    %102 = vmatpush.msra.mxu0 0.0
    %103 = vmatpush.msra.mxu0 0.0
    %104 = vmatpush.msra.mxu0 0.0
    %105 = vmatpush.msra.mxu0 0.0
    %106 = vmatpush.msra.mxu0 0.0
    %107 = vmatpush.msra.mxu0 0.0
    %108 = vmatpush.msra.mxu0 0.0
    %109 = vmatpush.msra.mxu0 %v92
    %110 = vmatmul.f32.gmra.mxu0 %v88
    %v111 = vpop.f32.mrf.mxu0
    %v112 = vadd.f32 0.0, %v111
    %113 = vdwg.mxu0
    %v115 = vsel %vm86, %v84, 0
    %117 = vmatpush.msra.mxu0 0.0
    %118 = vmatpush.msra.mxu0 0.0
    %119 = vmatpush.msra.mxu0 0.0
    %120 = vmatpush.msra.mxu0 0.0
    %121 = vmatpush.msra.mxu0 0.0
    %122 = vmatpush.msra.mxu0 0.0
    %123 = vmatpush.msra.mxu0 0.0
    %124 = vmatpush.msra.mxu0 0.0
    %125 = vmatpush.msra.mxu0 0.0
    %126 = vmatpush.msra.mxu0 0.0
    %127 = vmatpush.msra.mxu0 0.0
    %128 = vmatpush.msra.mxu0 0.0
    %129 = vmatpush.msra.mxu0 0.0
    %130 = vmatpush.msra.mxu0 0.0
    %131 = vmatpush.msra.mxu0 0.0
    %132 = vmatpush.msra.mxu0 %v92
    %133 = vmatmul.f32.gmra.mxu0 %v115
    %v134 = vpop.f32.mrf.mxu0
    %v135 = vadd.f32 %v112, %v134
    %136 = vdwg.mxu0
    %v137 = vsub.f32 %v21, %v135
    %v138 = vmul.f32 %v137, %v137
    %v139 = vpack.c.bf16 %v138, %v138
    %v140 = vunpack.c.l.bf16 %v139
    %v141 = vsub.f32 %v138, %v140
    %142 = vmatpush.msra.mxu0 %v37
    %143 = vmatpush.msra.mxu0 %v36
    %144 = vmatpush.msra.mxu0 %v35
    %145 = vmatpush.msra.mxu0 %v34
    %146 = vmatpush.msra.mxu0 %v33
    %147 = vmatpush.msra.mxu0 %v32
    %148 = vmatpush.msra.mxu0 %v31
    %149 = vmatpush.msra.mxu0 %v30
    %150 = vmatpush.msra.mxu0 %v29
    %151 = vmatpush.msra.mxu0 %v28
    %152 = vmatpush.msra.mxu0 %v27
    %153 = vmatpush.msra.mxu0 %v26
    %154 = vmatpush.msra.mxu0 %v25
    %155 = vmatpush.msra.mxu0 %v24
    %156 = vmatpush.msra.mxu0 %v23
    %157 = vmatpush.msra.mxu0 %v22
    %158 = vmatmul.f32.gmra.mxu0 %v141
    %v159 = vpop.f32.mrf.mxu0
    %v160 = vadd.f32 0.0, %v159
    %161 = vdwg.mxu0
    %162 = vmatpush.msra.mxu0 %v37
    %163 = vmatpush.msra.mxu0 %v36
    %164 = vmatpush.msra.mxu0 %v35
    %165 = vmatpush.msra.mxu0 %v34
    %166 = vmatpush.msra.mxu0 %v33
    %167 = vmatpush.msra.mxu0 %v32
    %168 = vmatpush.msra.mxu0 %v31
    %169 = vmatpush.msra.mxu0 %v30
    %170 = vmatpush.msra.mxu0 %v29
    %171 = vmatpush.msra.mxu0 %v28
    %172 = vmatpush.msra.mxu0 %v27
    %173 = vmatpush.msra.mxu0 %v26
    %174 = vmatpush.msra.mxu0 %v25
    %175 = vmatpush.msra.mxu0 %v24
    %176 = vmatpush.msra.mxu0 %v23
    %177 = vmatpush.msra.mxu0 %v22
    %178 = vmatmul.f32.gmra.mxu0 %v140
    %v179 = vpop.f32.mrf.mxu0
    %v180 = vadd.f32 %v160, %v179
    %181 = vdwg.mxu0
    %v182 = vmul.f32 %v180, 0.032258064
    %v183 = vrsqrt.pop %v182
    %v184 = vmul.f32 %v183, %v182
    %v185 = vmul.f32 %v184, %v183
    %v186 = vmul.f32 0.5, %v185
    %v187 = vsub.f32 1.5, %v186
    %v188 = vmul.f32 %v183, %v187
    %v189 = vmul.f32 %v182, %v188
    %vm190 = vcmp.eq.f32.partialorder %v182, inf
    %v191 = vsel %vm190, %v182, %v189
    %vm192 = vcmp.eq.f32.partialorder %v182, 0.0
    %v193 = vand.u32 %v182, 2147483648
    %v194 = vsel %vm192, %v193, %v191
    %v195 = vadd.f32 %v194, 0.001
    %v196 = vrcp.pop %v195
    %v197 = vmul.f32 %v195, %v196
    %v198 = vsub.f32 2.0, %v197
    %v199 = vmul.f32 %v196, %v198
    %v200 = vpack.c.bf16 %v199, %v199
    %v201 = vunpack.c.l.bf16 %v200
    %v202 = vsub.f32 %v199, %v201
    %v204 = vsel %vm86, %v202, 0
    %206 = vmatpush.msra.mxu0 0.0
    %207 = vmatpush.msra.mxu0 0.0
    %208 = vmatpush.msra.mxu0 0.0
    %209 = vmatpush.msra.mxu0 0.0
    %210 = vmatpush.msra.mxu0 0.0
    %211 = vmatpush.msra.mxu0 0.0
    %212 = vmatpush.msra.mxu0 0.0
    %213 = vmatpush.msra.mxu0 0.0
    %214 = vmatpush.msra.mxu0 0.0
    %215 = vmatpush.msra.mxu0 0.0
    %216 = vmatpush.msra.mxu0 0.0
    %217 = vmatpush.msra.mxu0 0.0
    %218 = vmatpush.msra.mxu0 0.0
    %219 = vmatpush.msra.mxu0 0.0
    %220 = vmatpush.msra.mxu0 0.0
    %221 = vmatpush.msra.mxu0 %v92
    %222 = vmatmul.f32.gmra.mxu0 %v204
    %v223 = vpop.f32.mrf.mxu0
    %v224 = vadd.f32 0.0, %v223
    %225 = vdwg.mxu0
    %v227 = vsel %vm86, %v201, 0
    %229 = vmatpush.msra.mxu0 0.0
    %230 = vmatpush.msra.mxu0 0.0
    %231 = vmatpush.msra.mxu0 0.0
    %232 = vmatpush.msra.mxu0 0.0
    %233 = vmatpush.msra.mxu0 0.0
    %234 = vmatpush.msra.mxu0 0.0
    %235 = vmatpush.msra.mxu0 0.0
    %236 = vmatpush.msra.mxu0 0.0
    %237 = vmatpush.msra.mxu0 0.0
    %238 = vmatpush.msra.mxu0 0.0
    %239 = vmatpush.msra.mxu0 0.0
    %240 = vmatpush.msra.mxu0 0.0
    %241 = vmatpush.msra.mxu0 0.0
    %242 = vmatpush.msra.mxu0 0.0
    %243 = vmatpush.msra.mxu0 0.0
    %244 = vmatpush.msra.mxu0 %v92
    %245 = vmatmul.f32.gmra.mxu0 %v227
    %v246 = vpop.f32.mrf.mxu0
    %v247 = vadd.f32 %v224, %v246
    %248 = vdwg.mxu0
    %v249 = vmul.f32 %v137, %v247
    %v250 = vld [vmem:[%s1] sm:$0x1]
    %v252 = vperm.slane %v250, 0
    %v254 = vmul.f32 %v249, %v252
    %v255 = vld [vmem:[%s2] sm:$0x1]
    %v257 = vperm.slane %v255, 0
    %v259 = vadd.f32 %v254, %v257
    %260 = vst [vmem:[#allocation2] sm:$0xf] %v259
    // Predicated region
    $region22: #{tpu_custom_call.1} parent=1 // pred_check
      _
    $region23: #{tpu_custom_call.1} parent=1 // pred_check_branch
      %262 = sbr.rel (0) target = $region25
    $region24: #{tpu_custom_call.1} parent=1 // pred_region
      %264 = vsyncadd [#allocation3], 0
      %s266 = sshll.u32 [#allocation2], 4
      %s267 = int_to_ptr.vmem [resolvable:$true] %s266
      %s268 = sshll.u32 %s5, 4
      %s269 = int_to_ptr.hbm [resolvable:$true] %s268
      %271 = dma.vmem_to_hbm [thread:$0]  %s267, 64, %s269, [#allocation3]
    $region25: #{tpu_custom_call.1} parent=1 // pred_fallthru
      _
    // Predicated region
    $region26: #{tpu_custom_call.1} parent=1 // pred_check
      _
    $region27: #{tpu_custom_call.1} parent=1 // pred_check_branch
      %273 = sbr.rel (0) target = $region29
    $region28: #{tpu_custom_call.1} parent=1 // pred_region
      %275 = dma.done [#allocation3], 64
    $region29: #{tpu_custom_call.1} parent=1 // pred_fallthru
      _
    %276 = vsyncpa [#allocation3], 1

</llo_original>
